<compile_context>
chip_gen: v5e
topology: v5e:2x2
jax: 0.10.0
libtpu: 0.0.40
codegen_flags: <defaults>
</compile_context>

<pallas_src>
import functools

import jax
import jax.numpy as jnp
from jax.experimental import pallas as pl
from jax.experimental.pallas import tpu as pltpu

BN_EPS = 1e-5


def _round_up(n, m):
    return ((n + m - 1) // m) * m


def _row_offsets(n_input, n_hidden):
    r_w1 = 0
    r_w2 = r_w1 + _round_up(n_input, 8)
    r_w3 = r_w2 + _round_up(n_hidden, 8)
    r_vec = r_w3 + _round_up(n_hidden, 8)
    total_rows = r_vec + 8
    return r_w1, r_w2, r_w3, r_vec, total_rows


def _batchnorm(h, gamma, beta, inv_b):
    # PyTorch train()-mode BatchNorm1d: batch stats, biased variance, eps=1e-5.
    # Variance via E[h^2] - mean^2 so the two XLU reductions are independent and
    # can overlap; the extra h*h multiply rides in spare VALU slots.
    s1 = jnp.sum(h, axis=0, keepdims=True)
    s2 = jnp.sum(h * h, axis=0, keepdims=True)
    mean = s1 * inv_b
    var = jnp.maximum(s2 * inv_b - mean * mean, 0.0)     # clamp cancellation noise
    scale = jax.lax.rsqrt(var + BN_EPS) * gamma          # (1, n): gamma folded in
    shift = beta - mean * scale                          # (1, n)
    return h * scale + shift


def _fc3_kernel(x_ref, p_ref, o_ref, *, n_input, n_hidden,
                r_w1, r_w2, r_w3, r_vec):
    x = x_ref[...]                                       # (B, n_input)
    inv_b = 1.0 / x.shape[0]                             # static python float

    # Static, sublane-aligned slices of the packed param slab (zero-cost views).
    w1 = p_ref[r_w1:r_w1 + n_input, :]                   # (n_input, n_hidden)
    w2 = p_ref[r_w2:r_w2 + n_hidden, :]                  # (n_hidden, n_hidden)
    w3 = p_ref[r_w3:r_w3 + n_hidden, :]                  # cols >= n_input are 0
    vecs = p_ref[r_vec:r_vec + 8, :]                     # one aligned (8, n_hidden) load
    g1, be1 = vecs[0:1, :], vecs[1:2, :]
    g2, be2 = vecs[2:3, :], vecs[3:4, :]
    b3 = vecs[4:5, :]                                    # cols >= n_input are 0

    dot = functools.partial(jnp.dot,
                            preferred_element_type=jnp.float32,
                            precision=jax.lax.Precision.HIGHEST)

    # Layer 1: Linear (bias cancelled by BN mean-subtract) -> BN -> Tanh
    h = jnp.tanh(_batchnorm(dot(x, w1), g1, be1, inv_b))
    # Layer 2: Linear (bias cancelled) -> BN -> ReLU
    h = jnp.maximum(_batchnorm(dot(h, w2), g2, be2, inv_b), 0.0)
    # Layer 3: Linear -> Tanh (only the first n_input lanes are real outputs)
    h = dot(h, w3) + b3
    o_ref[...] = jnp.tanh(h[:, :n_input])


def fc_regression_3layers_batched(x, param_slab, n_input, n_hidden):
    """Run N independent full batches in one pallas_call.

    x: (N, B, n_input).  Each grid step processes one complete batch so
    BatchNorm statistics stay global per batch.
    """
    N, B, _ = x.shape
    r_w1, r_w2, r_w3, r_vec, rows = _row_offsets(n_input, n_hidden)
    kernel = functools.partial(
        _fc3_kernel, n_input=n_input, n_hidden=n_hidden,
        r_w1=r_w1, r_w2=r_w2, r_w3=r_w3, r_vec=r_vec)
    return pl.pallas_call(
        kernel,
        out_shape=jax.ShapeDtypeStruct((N, B, n_input), jnp.float32),
        grid=(N,),
        in_specs=[
            # One full batch per grid step (leading instance dim squeezed out).
            pl.BlockSpec((None, B, n_input), lambda i: (i, 0, 0)),
            # Param slab: same block every step -> stays resident in VMEM.
            pl.BlockSpec((rows, n_hidden), lambda i: (0, 0)),
        ],
        out_specs=pl.BlockSpec((None, B, n_input), lambda i: (i, 0, 0)),
        compiler_params=pltpu.CompilerParams(
            dimension_semantics=("parallel",)),   # shards instances across TCs on v7x
    )(x, param_slab)


def fc_regression_3layers(x, param_slab, n_input, n_hidden):
    """Single-batch convenience wrapper. x: (B, n_input)."""
    return fc_regression_3layers_batched(x[None], param_slab, n_input, n_hidden)[0]


# ----------------------- parameter construction / packing -----------------------

def xavier_normal(key, fan_in, fan_out):
    std = jnp.sqrt(2.0 / (fan_in + fan_out))
    # PyTorch Linear weight is (out, in); we store transposed (in, out) for x @ W.
    return (std * jax.random.normal(key, (fan_in, fan_out))).astype(jnp.float32)


def linear_bias(key, fan_in, fan_out):
    bound = 1.0 / jnp.sqrt(float(fan_in))
    return jax.random.uniform(key, (fan_out,), minval=-bound, maxval=bound,
                              dtype=jnp.float32)


def init_params(key, n_input, n_hidden):
    ks = jax.random.split(key, 4)
    w1 = xavier_normal(ks[0], n_input, n_hidden)
    w2 = xavier_normal(ks[1], n_hidden, n_hidden)
    w3 = xavier_normal(ks[2], n_hidden, n_input)
    b3 = linear_bias(ks[3], n_hidden, n_input)
    g1 = jnp.ones((n_hidden,), jnp.float32)
    be1 = jnp.zeros((n_hidden,), jnp.float32)
    g2 = jnp.ones((n_hidden,), jnp.float32)
    be2 = jnp.zeros((n_hidden,), jnp.float32)
    # b1/b2 (Linear biases feeding BatchNorm) are omitted: exactly cancelled by BN.
    return (w1, w2, w3, g1, be1, g2, be2, b3)


def pack_params(params, n_input, n_hidden):
    """Pack all parameters into one sublane-aligned (rows, n_hidden) f32 slab."""
    (w1, w2, w3, g1, be1, g2, be2, b3) = params
    assert n_input <= n_hidden, "packing layout assumes n_input <= n_hidden"
    r_w1, r_w2, r_w3, r_vec, rows = _row_offsets(n_input, n_hidden)
    slab = jnp.zeros((rows, n_hidden), jnp.float32)
    slab = slab.at[r_w1:r_w1 + n_input, :].set(w1)
    slab = slab.at[r_w2:r_w2 + n_hidden, :].set(w2)
    slab = slab.at[r_w3:r_w3 + n_hidden, :n_input].set(w3)   # zero-padded lanes
    slab = slab.at[r_vec + 0, :].set(g1)
    slab = slab.at[r_vec + 1, :].set(be1)
    slab = slab.at[r_vec + 2, :].set(g2)
    slab = slab.at[r_vec + 3, :].set(be2)
    slab = slab.at[r_vec + 4, :n_input].set(b3)              # zero-padded lanes
    return slab


# ------------------------------------ demo ------------------------------------

if __name__ == "__main__":
    n_input, n_hidden, batch, n_instances = 16, 32, 8, 4

    key = jax.random.PRNGKey(0)
    k_x, k_p = jax.random.split(key)
    # n_instances independent full batches, processed by a single pallas_call.
    x = jax.random.normal(k_x, (n_instances, batch, n_input), dtype=jnp.float32)

    params = init_params(k_p, n_input, n_hidden)
    param_slab = pack_params(params, n_input, n_hidden)

    out = fc_regression_3layers_batched(x, param_slab, n_input, n_hidden)
    out = jax.block_until_ready(out)

    # Single-batch wrapper path as well.
    out_single = jax.block_until_ready(
        fc_regression_3layers(x[0], param_slab, n_input, n_hidden))

    # Pure-JAX reference (centered-variance BN, as PyTorch; b1/b2 omitted as well --
    # identical output for any bias values since BatchNorm subtracts the batch mean).
    def ref_forward(xb, params):
        (w1, w2, w3, g1, be1, g2, be2, b3) = params

        def bn(h, g, b):
            m = h.mean(0, keepdims=True)
            v = ((h - m) ** 2).mean(0, keepdims=True)
            return (h - m) / jnp.sqrt(v + BN_EPS) * g + b

        h = jnp.tanh(bn(xb @ w1, g1, be1))
        h = jnp.maximum(bn(h @ w2, g2, be2), 0.0)
        return jnp.tanh(h @ w3 + b3)

    expected = jnp.stack([ref_forward(x[i], params) for i in range(n_instances)])
    assert out.shape == (n_instances, batch, n_input)
    assert jnp.allclose(out, expected, atol=1e-5, rtol=1e-5)
    assert jnp.allclose(out_single, expected[0], atol=1e-5, rtol=1e-5)

    print("KERNEL_OK")
</pallas_src>

<mosaic_0001>
module attributes {stable_mosaic.version = 11 : i64} {
  func.func @_fc3_kernel(%arg0: i32, %arg1: memref<1x8x16xf32, #tpu.memory_space<vmem>>, %arg2: memref<88x32xf32, #tpu.memory_space<vmem>>, %arg3: memref<1x8x16xf32, #tpu.memory_space<vmem>>) attributes {dimension_semantics = [#tpu.dimension_semantics<parallel>], iteration_bounds = array<i64: 4>, scalar_prefetch = 0 : i64, scratch_operands = 0 : i64, tpu.core_type = #tpu.core_type<tc>, window_params = [{transform_indices = @transform_0, window_bounds = array<i64: 1, 8, 16>}, {pipeline_mode = #tpu.pipeline_mode<synchronous>, transform_indices = @transform_1, window_bounds = array<i64: 88, 32>}, {transform_indices = @transform_2, window_bounds = array<i64: 1, 8, 16>}]} {
    %c0 = arith.constant 0 : index
    %c0_0 = arith.constant 0 : index
    %c0_1 = arith.constant 0 : index
    %0 = vector.load %arg1[%c0, %c0_0, %c0_1] : memref<1x8x16xf32, #tpu.memory_space<vmem>>, vector<1x8x16xf32>
    %1 = vector.shape_cast %0 : vector<1x8x16xf32> to vector<8x16xf32>
    %c0_2 = arith.constant 0 : index
    %c0_3 = arith.constant 0 : index
    %2 = vector.load %arg2[%c0_2, %c0_3] : memref<88x32xf32, #tpu.memory_space<vmem>>, vector<16x32xf32>
    %c16 = arith.constant 16 : index
    %c0_4 = arith.constant 0 : index
    %3 = vector.load %arg2[%c16, %c0_4] : memref<88x32xf32, #tpu.memory_space<vmem>>, vector<32x32xf32>
    %c48 = arith.constant 48 : index
    %c0_5 = arith.constant 0 : index
    %4 = vector.load %arg2[%c48, %c0_5] : memref<88x32xf32, #tpu.memory_space<vmem>>, vector<32x32xf32>
    %c80 = arith.constant 80 : index
    %c0_6 = arith.constant 0 : index
    %5 = vector.load %arg2[%c80, %c0_6] : memref<88x32xf32, #tpu.memory_space<vmem>>, vector<8x32xf32>
    %6 = vector.extract_strided_slice %5 {offsets = [0, 0], sizes = [1, 32], strides = [1, 1]} : vector<8x32xf32> to vector<1x32xf32>
    %7 = vector.extract_strided_slice %5 {offsets = [1, 0], sizes = [1, 32], strides = [1, 1]} : vector<8x32xf32> to vector<1x32xf32>
    %8 = vector.extract_strided_slice %5 {offsets = [2, 0], sizes = [1, 32], strides = [1, 1]} : vector<8x32xf32> to vector<1x32xf32>
    %9 = vector.extract_strided_slice %5 {offsets = [3, 0], sizes = [1, 32], strides = [1, 1]} : vector<8x32xf32> to vector<1x32xf32>
    %10 = vector.extract_strided_slice %5 {offsets = [4, 0], sizes = [1, 32], strides = [1, 1]} : vector<8x32xf32> to vector<1x32xf32>
    %cst = arith.constant dense<0.000000e+00> : vector<8x32xf32>
    %11 = tpu.matmul %1, %2, %cst {dimension_numbers = #tpu.dot_dimension_numbers<[1], [0], [0], [1], [0, 0, 1, 1], [], []>, precision = #tpu.contract_precision<fp32>} : vector<8x16xf32>, vector<16x32xf32>, vector<8x32xf32> -> vector<8x32xf32>
    %cst_7 = arith.constant dense<0.000000e+00> : vector<32xf32>
    %12 = vector.multi_reduction <add>, %11, %cst_7 [0] : vector<8x32xf32> to vector<32xf32>
    %13 = vector.shape_cast %12 : vector<32xf32> to vector<1x32xf32>
    %14 = arith.mulf %11, %11 : vector<8x32xf32>
    %cst_8 = arith.constant dense<0.000000e+00> : vector<32xf32>
    %15 = vector.multi_reduction <add>, %14, %cst_8 [0] : vector<8x32xf32> to vector<32xf32>
    %16 = vector.shape_cast %15 : vector<32xf32> to vector<1x32xf32>
    %cst_9 = arith.constant 1.250000e-01 : f32
    %17 = vector.broadcast %cst_9 : f32 to vector<1x32xf32>
    %18 = arith.mulf %13, %17 : vector<1x32xf32>
    %cst_10 = arith.constant 1.250000e-01 : f32
    %19 = vector.broadcast %cst_10 : f32 to vector<1x32xf32>
    %20 = arith.mulf %16, %19 : vector<1x32xf32>
    %21 = arith.mulf %18, %18 : vector<1x32xf32>
    %22 = arith.subf %20, %21 : vector<1x32xf32>
    %cst_11 = arith.constant 0.000000e+00 : f32
    %23 = vector.broadcast %cst_11 : f32 to vector<1x32xf32>
    %24 = arith.maximumf %22, %23 : vector<1x32xf32>
    %cst_12 = arith.constant 9.99999974E-6 : f32
    %25 = vector.broadcast %cst_12 : f32 to vector<1x32xf32>
    %26 = arith.addf %24, %25 : vector<1x32xf32>
    %27 = math.rsqrt %26 : vector<1x32xf32>
    %28 = arith.mulf %27, %6 : vector<1x32xf32>
    %29 = arith.mulf %18, %28 : vector<1x32xf32>
    %30 = arith.subf %7, %29 : vector<1x32xf32>
    %31 = vector.broadcast %28 : vector<1x32xf32> to vector<8x32xf32>
    %32 = arith.mulf %11, %31 : vector<8x32xf32>
    %33 = vector.broadcast %30 : vector<1x32xf32> to vector<8x32xf32>
    %34 = arith.addf %32, %33 : vector<8x32xf32>
    %35 = math.tanh %34 : vector<8x32xf32>
    %cst_13 = arith.constant dense<0.000000e+00> : vector<8x32xf32>
    %36 = tpu.matmul %35, %3, %cst_13 {dimension_numbers = #tpu.dot_dimension_numbers<[1], [0], [0], [1], [0, 0, 1, 1], [], []>, precision = #tpu.contract_precision<fp32>} : vector<8x32xf32>, vector<32x32xf32>, vector<8x32xf32> -> vector<8x32xf32>
    %cst_14 = arith.constant dense<0.000000e+00> : vector<32xf32>
    %37 = vector.multi_reduction <add>, %36, %cst_14 [0] : vector<8x32xf32> to vector<32xf32>
    %38 = vector.shape_cast %37 : vector<32xf32> to vector<1x32xf32>
    %39 = arith.mulf %36, %36 : vector<8x32xf32>
    %cst_15 = arith.constant dense<0.000000e+00> : vector<32xf32>
    %40 = vector.multi_reduction <add>, %39, %cst_15 [0] : vector<8x32xf32> to vector<32xf32>
    %41 = vector.shape_cast %40 : vector<32xf32> to vector<1x32xf32>
    %cst_16 = arith.constant 1.250000e-01 : f32
    %42 = vector.broadcast %cst_16 : f32 to vector<1x32xf32>
    %43 = arith.mulf %38, %42 : vector<1x32xf32>
    %cst_17 = arith.constant 1.250000e-01 : f32
    %44 = vector.broadcast %cst_17 : f32 to vector<1x32xf32>
    %45 = arith.mulf %41, %44 : vector<1x32xf32>
    %46 = arith.mulf %43, %43 : vector<1x32xf32>
    %47 = arith.subf %45, %46 : vector<1x32xf32>
    %cst_18 = arith.constant 0.000000e+00 : f32
    %48 = vector.broadcast %cst_18 : f32 to vector<1x32xf32>
    %49 = arith.maximumf %47, %48 : vector<1x32xf32>
    %cst_19 = arith.constant 9.99999974E-6 : f32
    %50 = vector.broadcast %cst_19 : f32 to vector<1x32xf32>
    %51 = arith.addf %49, %50 : vector<1x32xf32>
    %52 = math.rsqrt %51 : vector<1x32xf32>
    %53 = arith.mulf %52, %8 : vector<1x32xf32>
    %54 = arith.mulf %43, %53 : vector<1x32xf32>
    %55 = arith.subf %9, %54 : vector<1x32xf32>
    %56 = vector.broadcast %53 : vector<1x32xf32> to vector<8x32xf32>
    %57 = arith.mulf %36, %56 : vector<8x32xf32>
    %58 = vector.broadcast %55 : vector<1x32xf32> to vector<8x32xf32>
    %59 = arith.addf %57, %58 : vector<8x32xf32>
    %cst_20 = arith.constant 0.000000e+00 : f32
    %60 = vector.broadcast %cst_20 : f32 to vector<8x32xf32>
    %61 = arith.maximumf %59, %60 : vector<8x32xf32>
    %cst_21 = arith.constant dense<0.000000e+00> : vector<8x32xf32>
    %62 = tpu.matmul %61, %4, %cst_21 {dimension_numbers = #tpu.dot_dimension_numbers<[1], [0], [0], [1], [0, 0, 1, 1], [], []>, precision = #tpu.contract_precision<fp32>} : vector<8x32xf32>, vector<32x32xf32>, vector<8x32xf32> -> vector<8x32xf32>
    %63 = vector.broadcast %10 : vector<1x32xf32> to vector<8x32xf32>
    %64 = arith.addf %62, %63 : vector<8x32xf32>
    %65 = vector.extract_strided_slice %64 {offsets = [0, 0], sizes = [8, 16], strides = [1, 1]} : vector<8x32xf32> to vector<8x16xf32>
    %66 = math.tanh %65 : vector<8x16xf32>
    %c0_22 = arith.constant 0 : index
    %c0_23 = arith.constant 0 : index
    %c0_24 = arith.constant 0 : index
    %67 = vector.load %arg3[%c0_22, %c0_23, %c0_24] : memref<1x8x16xf32, #tpu.memory_space<vmem>>, vector<1x8x16xf32>
    %68 = vector.shape_cast %67 : vector<1x8x16xf32> to vector<8x16xf32>
    %69 = vector.shape_cast %66 : vector<8x16xf32> to vector<1x8x16xf32>
    tpu.vector_store %arg3[%c0_22, %c0_23, %c0_24], %69 {strides = array<i32>} : memref<1x8x16xf32, #tpu.memory_space<vmem>>, vector<1x8x16xf32>,
    return
  }
  func.func @transform_0(%arg0: i32) -> (i32, i32, i32) {
    %c0_i32 = arith.constant 0 : i32
    %c0_i32_0 = arith.constant 0 : i32
    %c0_i32_1 = arith.constant 0 : i32
    return %arg0, %c0_i32, %c0_i32_0 : i32, i32, i32
  }
  func.func @transform_1(%arg0: i32) -> (i32, i32) {
    %c0_i32 = arith.constant 0 : i32
    %c0_i32_0 = arith.constant 0 : i32
    %c0_i32_1 = arith.constant 0 : i32
    return %c0_i32, %c0_i32_0 : i32, i32
  }
  func.func @transform_2(%arg0: i32) -> (i32, i32, i32) {
    %c0_i32 = arith.constant 0 : i32
    %c0_i32_0 = arith.constant 0 : i32
    %c0_i32_1 = arith.constant 0 : i32
    return %arg0, %c0_i32, %c0_i32_0 : i32, i32, i32
  }
}

</mosaic_0001>

<llo_original>
// kernel: tpu_custom_call.1
$region0: #{tpu_custom_call.1}
  #allocation0 [shape = 'u32[]', space=smem, size = 0x4, offset = 0x4, fixed_abs, tag = 'smem constant byte address 0x4 - core index']
  #allocation1 [shape = 'u32[72,128]{1,0:T(1,128)}', space=vmem, size = 0x9000, scoped, tag = 'internal scratch']
  %s0 = inlined_call_operand.vmem [shape: f32[4,8,16], index: 0, kind: input, shape index: {}]
  %s1 = inlined_call_operand.vmem [shape: f32[88,32], index: 1, kind: input, shape index: {}]
  %s2 = inlined_call_operand.hbm [shape: f32[4,8,16], index: 2, kind: output, shape index: {}]
  %s3 = sld [smem:[#allocation0]]
  $region41: #{tpu_custom_call.1} parent=0
    _
  %s5 = ssub.s32 1, %s3
  %s6 = scalar_select 0, %s5, %s3
  $region1: #{tpu_custom_call.1} parent=0
    #allocation2 [shape = 'u8[8192]{0}', space=vmem, size = 0x2000, scoped, tag = 'output window, operand 0']
    #allocation3 [shape = 's32[2]{0}', space=sflag, size = 0x8, scoped, tag = 'scoped memory for tpu_custom_call.1']
    %7 = vsyncpa [#allocation3], 0
    %s8 = scalar_lea.sflag [#allocation3], 1
    %9 = vsyncpa %s8, 0
    loop: start=0, step=1, limit=6
    $region2: #{tpu_custom_call.1} parent=1 // loop_pre_header
      _
    $region3: #{tpu_custom_call.1} parent=1 // loop_header
      %s11 = sphi 0, %s15
      %p12 = scmp.ge.s32.totalorder %s11, 6
      %s21 = sphi 0, %s23
      %s24 = sphi 0, %s21
      %s25 = sphi 0, %s24
      %s41 = sphi 0, %s25
      %s45 = sphi 0, %s45
      %s47 = sphi 0, %s45
      %s48 = sphi 0, %s47
      %s62 = sphi 0, %s48
      %s68 = sphi 0, %s70
      %s71 = sphi 0, %s68
      %s72 = sphi 0, %s71
      %s88 = sphi 0, %s72
    $region4: #{tpu_custom_call.1} parent=1 // loop_header_branch
      %14 = sbr.rel (%p12) target = $region8
    $region5: #{tpu_custom_call.1} parent=1 // loop_body
      %s16 = ssub.s32 %s11, 1
      %s17 = ssub.s32 %s11, 2
      %s18 = sadd.s32 %s11, 1
      %s19 = ssub.s32 %s11, %s18
      %p20 = scmp.eq.s32.totalorder %s19, 0
      %s22 = sadd.s32 %s21, 1
      %s23 = scalar_select %p20, %s21, %s22
      %p26 = pneg %p20
      %p27 = scmp.eq.s32.totalorder %s11, 3
      %p28 = por %p26, %p27
      %p29 = scmp.ne.s32.totalorder %s21, %s24
      %p30 = scmp.eq.s32.totalorder %s11, 0
      %p31 = por %p29, %p30
      %p32 = scmp.ne.s32.totalorder %s21, %s24
      %p33 = scmp.eq.s32.totalorder %s16, 3
      %p34 = por %p32, %p33
      %p35 = scmp.ne.s32.totalorder %s24, %s25
      %p36 = scmp.eq.s32.totalorder %s16, 0
      %p37 = por %p35, %p36
      %p38 = scmp.ne.s32.totalorder %s24, %s25
      %p39 = scmp.eq.s32.totalorder %s17, 3
      %p40 = por %p38, %p39
      %p42 = scmp.ne.s32.totalorder %s25, %s41
      %p43 = scmp.eq.s32.totalorder %s17, 0
      %p44 = por %p42, %p43
      %s46 = sadd.s32 %s45, 1
      %p49 = scmp.eq.s32.totalorder %s11, 3
      %p50 = scmp.ne.s32.totalorder %s45, %s47
      %p51 = scmp.eq.s32.totalorder %s11, 0
      %p52 = por %p50, %p51
      %p53 = scmp.ne.s32.totalorder %s45, %s47
      %p54 = scmp.eq.s32.totalorder %s16, 3
      %p55 = por %p53, %p54
      %p56 = scmp.ne.s32.totalorder %s47, %s48
      %p57 = scmp.eq.s32.totalorder %s16, 0
      %p58 = por %p56, %p57
      %p59 = scmp.ne.s32.totalorder %s47, %s48
      %p60 = scmp.eq.s32.totalorder %s17, 3
      %p61 = por %p59, %p60
      %p63 = scmp.ne.s32.totalorder %s48, %s62
      %p64 = scmp.eq.s32.totalorder %s17, 0
      %p65 = por %p63, %p64
      %s66 = ssub.s32 %s11, %s18
      %p67 = scmp.eq.s32.totalorder %s66, 0
      %s69 = sadd.s32 %s68, 1
      %s70 = scalar_select %p67, %s68, %s69
      %p73 = pneg %p67
      %p74 = scmp.eq.s32.totalorder %s11, 3
      %p75 = por %p73, %p74
      %p76 = scmp.ne.s32.totalorder %s68, %s71
      %p77 = scmp.eq.s32.totalorder %s11, 0
      %p78 = por %p76, %p77
      %p79 = scmp.ne.s32.totalorder %s68, %s71
      %p80 = scmp.eq.s32.totalorder %s16, 3
      %p81 = por %p79, %p80
      %p82 = scmp.ne.s32.totalorder %s71, %s72
      %p83 = scmp.eq.s32.totalorder %s16, 0
      %p84 = por %p82, %p83
      %p85 = scmp.ne.s32.totalorder %s71, %s72
      %p86 = scmp.eq.s32.totalorder %s17, 3
      %p87 = por %p85, %p86
      %p89 = scmp.ne.s32.totalorder %s72, %s88
      %p90 = scmp.eq.s32.totalorder %s17, 0
      %p91 = por %p89, %p90
      %p92 = scmp.le.s32.totalorder 1, %s11
      %p93 = scmp.lt.s32.totalorder %s11, 5
      %p94 = pnand %p92, %p93
      %p95 = pneg %p94
      // Predicated region
      $region9: #{tpu_custom_call.1} parent=5 // pred_check
        _
      $region10: #{tpu_custom_call.1} parent=5 // pred_check_branch
        %97 = sbr.rel (%p94) target = $region12
      $region11: #{tpu_custom_call.1} parent=5 // pred_region
        %s98 = ssub.s32 %s11, 1
        // Predicated region
        $region13: #{tpu_custom_call.1} parent=11 // pred_check
          %p99 = pneg %p58
        $region14: #{tpu_custom_call.1} parent=11 // pred_check_branch
          %101 = sbr.rel (%p99) target = $region16
        $region15: #{tpu_custom_call.1} parent=11 // pred_region
          _
        $region16: #{tpu_custom_call.1} parent=11 // pred_fallthru
          _
      $region12: #{tpu_custom_call.1} parent=5 // pred_fallthru
        _
      %p102 = scmp.lt.s32.totalorder %s11, 4
      // Predicated region
      $region17: #{tpu_custom_call.1} parent=5 // pred_check
        %p103 = pneg %p102
      $region18: #{tpu_custom_call.1} parent=5 // pred_check_branch
        %105 = sbr.rel (%p103) target = $region20
      $region19: #{tpu_custom_call.1} parent=5 // pred_region
        // Predicated region
        $region21: #{tpu_custom_call.1} parent=19 // pred_check
          %p106 = pneg %p31
        $region22: #{tpu_custom_call.1} parent=19 // pred_check_branch
          %108 = sbr.rel (%p106) target = $region24
        $region23: #{tpu_custom_call.1} parent=19 // pred_region
          %p109 = scmp.lt.s32.totalorder %s11, 3
          %s110 = scalar_select %p109, %s11, 3
          %s111 = smul.addr %s110, 8
          %s112 = scalar_lea.vmem %s0, %s111
        $region24: #{tpu_custom_call.1} parent=19 // pred_fallthru
          _
      $region20: #{tpu_custom_call.1} parent=5 // pred_fallthru
        _
      %p113 = scmp.le.s32.totalorder 1, %s11
      %p114 = scmp.lt.s32.totalorder %s11, 5
      %p115 = pnand %p113, %p114
      %p116 = pneg %p115
      // Predicated region
      $region25: #{tpu_custom_call.1} parent=5 // pred_check
        _
      $region26: #{tpu_custom_call.1} parent=5 // pred_check_branch
        %118 = sbr.rel (%p115) target = $region28
      $region27: #{tpu_custom_call.1} parent=5 // pred_region
        %s119 = ssub.s32 %s11, 1
        %p120 = scmp.lt.s32.totalorder %s16, 3
        %s121 = scalar_select %p120, %s16, 3
        %s122 = smul.addr %s121, 8
        %s123 = scalar_lea.vmem %s0, %s122
        %p124 = pneg %p37
        %p125 = pneg %p34
        %p126 = pneg %p58
        %p127 = pneg %p55
        %p128 = pneg %p84
        %p129 = pneg %p81
        %s130 = sand.u32 %s71, 1
        %s131 = scalar_lea.sflag [#allocation3], %s130
        %s132 = sand.u32 %s71, 1
        %s133 = smul.addr %s132, 8
        %s134 = scalar_lea.vmem [#allocation2], %s133
        %p135 = scmp.lt.s32.totalorder %s16, 3
        %s136 = scalar_select %p135, %s16, 3
        %s137 = smul.addr %s136, 8
        %s138 = scalar_lea.vmem %s0, %s137
        %v139 = vld [vmem:[%s138] sm:$0xff]
        %v140 = vld [vmem:[%s1] sm:$0xff]
        %v141 = vld [vmem:[%s1 + $0x8] sm:$0xff]
        %v142 = vld [vmem:[%s1 + $0x10] sm:$0xff]
        %v143 = vld [vmem:[%s1 + $0x18] sm:$0xff]
        %v144 = vld [vmem:[%s1 + $0x20] sm:$0xff]
        %v145 = vld [vmem:[%s1 + $0x28] sm:$0xff]
        %v146 = vld [vmem:[%s1 + $0x30] sm:$0xff]
        %v147 = vld [vmem:[%s1 + $0x38] sm:$0xff]
        %v148 = vld [vmem:[%s1 + $0x40] sm:$0xff]
        %v149 = vld [vmem:[%s1 + $0x48] sm:$0xff]
        %v150 = vld [vmem:[%s1 + $0x50] sm:$0xff]
        %vm151 = vcmask 130048
        %v153 = vsel %vm151, %v139, 0
        %155 = vmatpush.msra.mxu0 0.0
        %156 = vmatpush.msra.mxu0 0.0
        %157 = vmatpush.msra.mxu0 0.0
        %158 = vmatpush.msra.mxu0 0.0
        %159 = vmatpush.msra.mxu0 0.0
        %160 = vmatpush.msra.mxu0 0.0
        %161 = vmatpush.msra.mxu0 0.0
        %162 = vmatpush.msra.mxu0 0.0
        %163 = vmatpush.msra.mxu0 0.0
        %164 = vmatpush.msra.mxu0 0.0
        %165 = vmatpush.msra.mxu0 0.0
        %166 = vmatpush.msra.mxu0 0.0
        %167 = vmatpush.msra.mxu0 0.0
        %168 = vmatpush.msra.mxu0 0.0
        %v169 = vand.u32 %v141, 4294901760
        %170 = vmatpush.msra.mxu0 %v169
        %v171 = vand.u32 %v140, 4294901760
        %172 = vmatpush.msra.mxu0 %v171
        %v173 = vand.u32 %v153, 4294901760
        %v174 = vsub.f32 %v153, %v173
        %v175 = vand.u32 %v174, 4294901760
        %v176 = vsub.f32 %v174, %v175
        %v177 = vand.u32 %v176, 4294901760
        %178 = vmatmul.f32.gmra.mxu0 %v177
        %v179 = vpop.f32.mrf.mxu0
        %v180 = vadd.f32 0.0, %v179
        %181 = vdwg.mxu0
        %182 = vmatpush.msra.mxu0 0.0
        %183 = vmatpush.msra.mxu0 0.0
        %184 = vmatpush.msra.mxu0 0.0
        %185 = vmatpush.msra.mxu0 0.0
        %186 = vmatpush.msra.mxu0 0.0
        %187 = vmatpush.msra.mxu0 0.0
        %188 = vmatpush.msra.mxu0 0.0
        %189 = vmatpush.msra.mxu0 0.0
        %190 = vmatpush.msra.mxu0 0.0
        %191 = vmatpush.msra.mxu0 0.0
        %192 = vmatpush.msra.mxu0 0.0
        %193 = vmatpush.msra.mxu0 0.0
        %194 = vmatpush.msra.mxu0 0.0
        %195 = vmatpush.msra.mxu0 0.0
        %v196 = vand.u32 %v141, 4294901760
        %v197 = vsub.f32 %v141, %v196
        %v198 = vand.u32 %v197, 4294901760
        %v199 = vsub.f32 %v197, %v198
        %v200 = vand.u32 %v199, 4294901760
        %201 = vmatpush.msra.mxu0 %v200
        %v202 = vand.u32 %v140, 4294901760
        %v203 = vsub.f32 %v140, %v202
        %v204 = vand.u32 %v203, 4294901760
        %v205 = vsub.f32 %v203, %v204
        %v206 = vand.u32 %v205, 4294901760
        %207 = vmatpush.msra.mxu0 %v206
        %v208 = vand.u32 %v153, 4294901760
        %209 = vmatmul.f32.gmra.mxu0 %v208
        %v210 = vpop.f32.mrf.mxu0
        %v211 = vadd.f32 %v180, %v210
        %212 = vdwg.mxu0
        %213 = vmatpush.msra.mxu0 0.0
        %214 = vmatpush.msra.mxu0 0.0
        %215 = vmatpush.msra.mxu0 0.0
        %216 = vmatpush.msra.mxu0 0.0
        %217 = vmatpush.msra.mxu0 0.0
        %218 = vmatpush.msra.mxu0 0.0
        %219 = vmatpush.msra.mxu0 0.0
        %220 = vmatpush.msra.mxu0 0.0
        %221 = vmatpush.msra.mxu0 0.0
        %222 = vmatpush.msra.mxu0 0.0
        %223 = vmatpush.msra.mxu0 0.0
        %224 = vmatpush.msra.mxu0 0.0
        %225 = vmatpush.msra.mxu0 0.0
        %226 = vmatpush.msra.mxu0 0.0
        %v227 = vand.u32 %v141, 4294901760
        %v228 = vsub.f32 %v141, %v227
        %229 = vmatpush.msra.mxu0 %v228
        %v230 = vand.u32 %v140, 4294901760
        %v231 = vsub.f32 %v140, %v230
        %232 = vmatpush.msra.mxu0 %v231
        %v233 = vand.u32 %v153, 4294901760
        %v234 = vsub.f32 %v153, %v233
        %235 = vmatmul.f32.gmra.mxu0 %v234
        %v236 = vpop.f32.mrf.mxu0
        %v237 = vadd.f32 %v211, %v236
        %238 = vdwg.mxu0
        %239 = vmatpush.msra.mxu0 0.0
        %240 = vmatpush.msra.mxu0 0.0
        %241 = vmatpush.msra.mxu0 0.0
        %242 = vmatpush.msra.mxu0 0.0
        %243 = vmatpush.msra.mxu0 0.0
        %244 = vmatpush.msra.mxu0 0.0
        %245 = vmatpush.msra.mxu0 0.0
        %246 = vmatpush.msra.mxu0 0.0
        %247 = vmatpush.msra.mxu0 0.0
        %248 = vmatpush.msra.mxu0 0.0
        %249 = vmatpush.msra.mxu0 0.0
        %250 = vmatpush.msra.mxu0 0.0
        %251 = vmatpush.msra.mxu0 0.0
        %252 = vmatpush.msra.mxu0 0.0
        %v253 = vand.u32 %v141, 4294901760
        %254 = vmatpush.msra.mxu0 %v253
        %v255 = vand.u32 %v140, 4294901760
        %256 = vmatpush.msra.mxu0 %v255
        %v257 = vand.u32 %v153, 4294901760
        %v258 = vsub.f32 %v153, %v257
        %v259 = vand.u32 %v258, 4294901760
        %260 = vmatmul.f32.gmra.mxu0 %v259
        %v261 = vpop.f32.mrf.mxu0
        %v262 = vadd.f32 %v237, %v261
        %263 = vdwg.mxu0
        %264 = vmatpush.msra.mxu0 0.0
        %265 = vmatpush.msra.mxu0 0.0
        %266 = vmatpush.msra.mxu0 0.0
        %267 = vmatpush.msra.mxu0 0.0
        %268 = vmatpush.msra.mxu0 0.0
        %269 = vmatpush.msra.mxu0 0.0
        %270 = vmatpush.msra.mxu0 0.0
        %271 = vmatpush.msra.mxu0 0.0
        %272 = vmatpush.msra.mxu0 0.0
        %273 = vmatpush.msra.mxu0 0.0
        %274 = vmatpush.msra.mxu0 0.0
        %275 = vmatpush.msra.mxu0 0.0
        %276 = vmatpush.msra.mxu0 0.0
        %277 = vmatpush.msra.mxu0 0.0
        %v278 = vand.u32 %v141, 4294901760
        %v279 = vsub.f32 %v141, %v278
        %v280 = vand.u32 %v279, 4294901760
        %281 = vmatpush.msra.mxu0 %v280
        %v282 = vand.u32 %v140, 4294901760
        %v283 = vsub.f32 %v140, %v282
        %v284 = vand.u32 %v283, 4294901760
        %285 = vmatpush.msra.mxu0 %v284
        %v286 = vand.u32 %v153, 4294901760
        %287 = vmatmul.f32.gmra.mxu0 %v286
        %v288 = vpop.f32.mrf.mxu0
        %v289 = vadd.f32 %v262, %v288
        %290 = vdwg.mxu0
        %291 = vmatpush.msra.mxu0 0.0
        %292 = vmatpush.msra.mxu0 0.0
        %293 = vmatpush.msra.mxu0 0.0
        %294 = vmatpush.msra.mxu0 0.0
        %295 = vmatpush.msra.mxu0 0.0
        %296 = vmatpush.msra.mxu0 0.0
        %297 = vmatpush.msra.mxu0 0.0
        %298 = vmatpush.msra.mxu0 0.0
        %299 = vmatpush.msra.mxu0 0.0
        %300 = vmatpush.msra.mxu0 0.0
        %301 = vmatpush.msra.mxu0 0.0
        %302 = vmatpush.msra.mxu0 0.0
        %303 = vmatpush.msra.mxu0 0.0
        %304 = vmatpush.msra.mxu0 0.0
        %v305 = vand.u32 %v141, 4294901760
        %306 = vmatpush.msra.mxu0 %v305
        %v307 = vand.u32 %v140, 4294901760
        %308 = vmatpush.msra.mxu0 %v307
        %v309 = vand.u32 %v153, 4294901760
        %310 = vmatmul.f32.gmra.mxu0 %v309
        %v311 = vpop.f32.mrf.mxu0
        %v312 = vadd.f32 %v289, %v311
        %313 = vdwg.mxu0
        %vm314 = vcmask 261120
        %v315 = vsel %vm314, %v312, 0.0
        %v316 = vrot.slane %v315, 4
        %v317 = vadd.f32 %v315, %v316
        %v318 = vrot.slane %v317, 2
        %v319 = vadd.f32 %v317, %v318
        %v320 = vrot.slane %v319, 1
        %v321 = vadd.f32 %v319, %v320
        %v322 = vmul.f32 %v312, %v312
        %v323 = vsel %vm314, %v322, 0.0
        %v324 = vrot.slane %v323, 4
        %v325 = vadd.f32 %v323, %v324
        %v326 = vrot.slane %v325, 2
        %v327 = vadd.f32 %v325, %v326
        %v328 = vrot.slane %v327, 1
        %v329 = vadd.f32 %v327, %v328
        %v330 = vmul.f32 %v321, 0.125
        %v331 = vmul.f32 %v329, 0.125
        %v332 = vmul.f32 %v330, %v330
        %v333 = vsub.f32 %v331, %v332
        %v334 = vmax.f32 %v333, 0.0
        %v335 = vadd.f32 %v334, 1e-05
        %v336 = vrsqrt.pop %v335
        %v337 = vmul.f32 %v336, %v335
        %v338 = vmul.f32 %v337, %v336
        %v339 = vmul.f32 0.5, %v338
        %v340 = vsub.f32 1.5, %v339
        %v341 = vmul.f32 %v336, %v340
        %vm342 = vweird.f32 %v335
        %vm343 = vweird.f32 %v336
        %vm344 = vmor %vm342, %vm343
        %v345 = vsel %vm344, %v336, %v341
        %v346 = vmul.f32 %v345, %v150
        %v347 = vmul.f32 %v330, %v346
        %v349 = vrot.slane %v347, 7
        %v351 = vsub.f32 %v150, %v349
        %v352 = vperm.slane %v346, 0
        %v353 = vmul.f32 %v312, %v352
        %v354 = vperm.slane %v351, 1
        %v355 = vadd.f32 %v353, %v354
        %v356 = vtanh.pop %v355
        %v358 = vsel %vm314, %v356, 0
        %360 = vmatpush.msra.mxu0 0.0
        %361 = vmatpush.msra.mxu0 0.0
        %362 = vmatpush.msra.mxu0 0.0
        %363 = vmatpush.msra.mxu0 0.0
        %364 = vmatpush.msra.mxu0 0.0
        %365 = vmatpush.msra.mxu0 0.0
        %366 = vmatpush.msra.mxu0 0.0
        %367 = vmatpush.msra.mxu0 0.0
        %368 = vmatpush.msra.mxu0 0.0
        %369 = vmatpush.msra.mxu0 0.0
        %370 = vmatpush.msra.mxu0 0.0
        %371 = vmatpush.msra.mxu0 0.0
        %v372 = vand.u32 %v145, 4294901760
        %373 = vmatpush.msra.mxu0 %v372
        %v374 = vand.u32 %v144, 4294901760
        %375 = vmatpush.msra.mxu0 %v374
        %v376 = vand.u32 %v143, 4294901760
        %377 = vmatpush.msra.mxu0 %v376
        %v378 = vand.u32 %v142, 4294901760
        %379 = vmatpush.msra.mxu0 %v378
        %v380 = vand.u32 %v358, 4294901760
        %v381 = vsub.f32 %v358, %v380
        %v382 = vand.u32 %v381, 4294901760
        %v383 = vsub.f32 %v381, %v382
        %v384 = vand.u32 %v383, 4294901760
        %385 = vmatmul.f32.gmra.mxu0 %v384
        %v386 = vpop.f32.mrf.mxu0
        %v387 = vadd.f32 0.0, %v386
        %388 = vdwg.mxu0
        %389 = vmatpush.msra.mxu0 0.0
        %390 = vmatpush.msra.mxu0 0.0
        %391 = vmatpush.msra.mxu0 0.0
        %392 = vmatpush.msra.mxu0 0.0
        %393 = vmatpush.msra.mxu0 0.0
        %394 = vmatpush.msra.mxu0 0.0
        %395 = vmatpush.msra.mxu0 0.0
        %396 = vmatpush.msra.mxu0 0.0
        %397 = vmatpush.msra.mxu0 0.0
        %398 = vmatpush.msra.mxu0 0.0
        %399 = vmatpush.msra.mxu0 0.0
        %400 = vmatpush.msra.mxu0 0.0
        %v401 = vand.u32 %v145, 4294901760
        %v402 = vsub.f32 %v145, %v401
        %v403 = vand.u32 %v402, 4294901760
        %v404 = vsub.f32 %v402, %v403
        %v405 = vand.u32 %v404, 4294901760
        %406 = vmatpush.msra.mxu0 %v405
        %v407 = vand.u32 %v144, 4294901760
        %v408 = vsub.f32 %v144, %v407
        %v409 = vand.u32 %v408, 4294901760
        %v410 = vsub.f32 %v408, %v409
        %v411 = vand.u32 %v410, 4294901760
        %412 = vmatpush.msra.mxu0 %v411
        %v413 = vand.u32 %v143, 4294901760
        %v414 = vsub.f32 %v143, %v413
        %v415 = vand.u32 %v414, 4294901760
        %v416 = vsub.f32 %v414, %v415
        %v417 = vand.u32 %v416, 4294901760
        %418 = vmatpush.msra.mxu0 %v417
        %v419 = vand.u32 %v142, 4294901760
        %v420 = vsub.f32 %v142, %v419
        %v421 = vand.u32 %v420, 4294901760
        %v422 = vsub.f32 %v420, %v421
        %v423 = vand.u32 %v422, 4294901760
        %424 = vmatpush.msra.mxu0 %v423
        %v425 = vand.u32 %v358, 4294901760
        %426 = vmatmul.f32.gmra.mxu0 %v425
        %v427 = vpop.f32.mrf.mxu0
        %v428 = vadd.f32 %v387, %v427
        %429 = vdwg.mxu0
        %430 = vmatpush.msra.mxu0 0.0
        %431 = vmatpush.msra.mxu0 0.0
        %432 = vmatpush.msra.mxu0 0.0
        %433 = vmatpush.msra.mxu0 0.0
        %434 = vmatpush.msra.mxu0 0.0
        %435 = vmatpush.msra.mxu0 0.0
        %436 = vmatpush.msra.mxu0 0.0
        %437 = vmatpush.msra.mxu0 0.0
        %438 = vmatpush.msra.mxu0 0.0
        %439 = vmatpush.msra.mxu0 0.0
        %440 = vmatpush.msra.mxu0 0.0
        %441 = vmatpush.msra.mxu0 0.0
        %v442 = vand.u32 %v145, 4294901760
        %v443 = vsub.f32 %v145, %v442
        %444 = vmatpush.msra.mxu0 %v443
        %v445 = vand.u32 %v144, 4294901760
        %v446 = vsub.f32 %v144, %v445
        %447 = vmatpush.msra.mxu0 %v446
        %v448 = vand.u32 %v143, 4294901760
        %v449 = vsub.f32 %v143, %v448
        %450 = vmatpush.msra.mxu0 %v449
        %v451 = vand.u32 %v142, 4294901760
        %v452 = vsub.f32 %v142, %v451
        %453 = vmatpush.msra.mxu0 %v452
        %v454 = vand.u32 %v358, 4294901760
        %v455 = vsub.f32 %v358, %v454
        %456 = vmatmul.f32.gmra.mxu0 %v455
        %v457 = vpop.f32.mrf.mxu0
        %v458 = vadd.f32 %v428, %v457
        %459 = vdwg.mxu0
        %460 = vmatpush.msra.mxu0 0.0
        %461 = vmatpush.msra.mxu0 0.0
        %462 = vmatpush.msra.mxu0 0.0
        %463 = vmatpush.msra.mxu0 0.0
        %464 = vmatpush.msra.mxu0 0.0
        %465 = vmatpush.msra.mxu0 0.0
        %466 = vmatpush.msra.mxu0 0.0
        %467 = vmatpush.msra.mxu0 0.0
        %468 = vmatpush.msra.mxu0 0.0
        %469 = vmatpush.msra.mxu0 0.0
        %470 = vmatpush.msra.mxu0 0.0
        %471 = vmatpush.msra.mxu0 0.0
        %v472 = vand.u32 %v145, 4294901760
        %473 = vmatpush.msra.mxu0 %v472
        %v474 = vand.u32 %v144, 4294901760
        %475 = vmatpush.msra.mxu0 %v474
        %v476 = vand.u32 %v143, 4294901760
        %477 = vmatpush.msra.mxu0 %v476
        %v478 = vand.u32 %v142, 4294901760
        %479 = vmatpush.msra.mxu0 %v478
        %v480 = vand.u32 %v358, 4294901760
        %v481 = vsub.f32 %v358, %v480
        %v482 = vand.u32 %v481, 4294901760
        %483 = vmatmul.f32.gmra.mxu0 %v482
        %v484 = vpop.f32.mrf.mxu0
        %v485 = vadd.f32 %v458, %v484
        %486 = vdwg.mxu0
        %487 = vmatpush.msra.mxu0 0.0
        %488 = vmatpush.msra.mxu0 0.0
        %489 = vmatpush.msra.mxu0 0.0
        %490 = vmatpush.msra.mxu0 0.0
        %491 = vmatpush.msra.mxu0 0.0
        %492 = vmatpush.msra.mxu0 0.0
        %493 = vmatpush.msra.mxu0 0.0
        %494 = vmatpush.msra.mxu0 0.0
        %495 = vmatpush.msra.mxu0 0.0
        %496 = vmatpush.msra.mxu0 0.0
        %497 = vmatpush.msra.mxu0 0.0
        %498 = vmatpush.msra.mxu0 0.0
        %v499 = vand.u32 %v145, 4294901760
        %v500 = vsub.f32 %v145, %v499
        %v501 = vand.u32 %v500, 4294901760
        %502 = vmatpush.msra.mxu0 %v501
        %v503 = vand.u32 %v144, 4294901760
        %v504 = vsub.f32 %v144, %v503
        %v505 = vand.u32 %v504, 4294901760
        %506 = vmatpush.msra.mxu0 %v505
        %v507 = vand.u32 %v143, 4294901760
        %v508 = vsub.f32 %v143, %v507
        %v509 = vand.u32 %v508, 4294901760
        %510 = vmatpush.msra.mxu0 %v509
        %v511 = vand.u32 %v142, 4294901760
        %v512 = vsub.f32 %v142, %v511
        %v513 = vand.u32 %v512, 4294901760
        %514 = vmatpush.msra.mxu0 %v513
        %v515 = vand.u32 %v358, 4294901760
        %516 = vmatmul.f32.gmra.mxu0 %v515
        %v517 = vpop.f32.mrf.mxu0
        %v518 = vadd.f32 %v485, %v517
        %519 = vdwg.mxu0
        %520 = vmatpush.msra.mxu0 0.0
        %521 = vmatpush.msra.mxu0 0.0
        %522 = vmatpush.msra.mxu0 0.0
        %523 = vmatpush.msra.mxu0 0.0
        %524 = vmatpush.msra.mxu0 0.0
        %525 = vmatpush.msra.mxu0 0.0
        %526 = vmatpush.msra.mxu0 0.0
        %527 = vmatpush.msra.mxu0 0.0
        %528 = vmatpush.msra.mxu0 0.0
        %529 = vmatpush.msra.mxu0 0.0
        %530 = vmatpush.msra.mxu0 0.0
        %531 = vmatpush.msra.mxu0 0.0
        %v532 = vand.u32 %v145, 4294901760
        %533 = vmatpush.msra.mxu0 %v532
        %v534 = vand.u32 %v144, 4294901760
        %535 = vmatpush.msra.mxu0 %v534
        %v536 = vand.u32 %v143, 4294901760
        %537 = vmatpush.msra.mxu0 %v536
        %v538 = vand.u32 %v142, 4294901760
        %539 = vmatpush.msra.mxu0 %v538
        %v540 = vand.u32 %v358, 4294901760
        %541 = vmatmul.f32.gmra.mxu0 %v540
        %v542 = vpop.f32.mrf.mxu0
        %v543 = vadd.f32 %v518, %v542
        %544 = vdwg.mxu0
        %v545 = vsel %vm314, %v543, 0.0
        %v546 = vrot.slane %v545, 4
        %v547 = vadd.f32 %v545, %v546
        %v548 = vrot.slane %v547, 2
        %v549 = vadd.f32 %v547, %v548
        %v550 = vrot.slane %v549, 1
        %v551 = vadd.f32 %v549, %v550
        %v552 = vmul.f32 %v543, %v543
        %v553 = vsel %vm314, %v552, 0.0
        %v554 = vrot.slane %v553, 4
        %v555 = vadd.f32 %v553, %v554
        %v556 = vrot.slane %v555, 2
        %v557 = vadd.f32 %v555, %v556
        %v558 = vrot.slane %v557, 1
        %v559 = vadd.f32 %v557, %v558
        %v560 = vmul.f32 %v551, 0.125
        %v561 = vmul.f32 %v559, 0.125
        %v562 = vmul.f32 %v560, %v560
        %v563 = vsub.f32 %v561, %v562
        %v564 = vmax.f32 %v563, 0.0
        %v565 = vadd.f32 %v564, 1e-05
        %v566 = vrsqrt.pop %v565
        %v567 = vmul.f32 %v566, %v565
        %v568 = vmul.f32 %v567, %v566
        %v569 = vmul.f32 0.5, %v568
        %v570 = vsub.f32 1.5, %v569
        %v571 = vmul.f32 %v566, %v570
        %vm572 = vweird.f32 %v565
        %vm573 = vweird.f32 %v566
        %vm574 = vmor %vm572, %vm573
        %v575 = vsel %vm574, %v566, %v571
        %v576 = vmul.f32 %v575, %v150
        %v577 = vmul.f32 %v560, %v576
        %v579 = vrot.slane %v577, 7
        %v581 = vsub.f32 %v150, %v579
        %v582 = vperm.slane %v576, 2
        %v583 = vmul.f32 %v543, %v582
        %v584 = vperm.slane %v581, 3
        %v585 = vadd.f32 %v583, %v584
        %v586 = vmax.f32 %v585, 0.0
        %v587 = vperm.slane %v150, 4
        %v589 = vsel %vm314, %v586, 0
        %591 = vmatpush.msra.mxu0 0.0
        %592 = vmatpush.msra.mxu0 0.0
        %593 = vmatpush.msra.mxu0 0.0
        %594 = vmatpush.msra.mxu0 0.0
        %595 = vmatpush.msra.mxu0 0.0
        %596 = vmatpush.msra.mxu0 0.0
        %597 = vmatpush.msra.mxu0 0.0
        %598 = vmatpush.msra.mxu0 0.0
        %599 = vmatpush.msra.mxu0 0.0
        %600 = vmatpush.msra.mxu0 0.0
        %601 = vmatpush.msra.mxu0 0.0
        %602 = vmatpush.msra.mxu0 0.0
        %v603 = vand.u32 %v149, 4294901760
        %604 = vmatpush.msra.mxu0 %v603
        %v605 = vand.u32 %v148, 4294901760
        %606 = vmatpush.msra.mxu0 %v605
        %v607 = vand.u32 %v147, 4294901760
        %608 = vmatpush.msra.mxu0 %v607
        %v609 = vand.u32 %v146, 4294901760
        %610 = vmatpush.msra.mxu0 %v609
        %v611 = vand.u32 %v589, 4294901760
        %v612 = vsub.f32 %v589, %v611
        %v613 = vand.u32 %v612, 4294901760
        %v614 = vsub.f32 %v612, %v613
        %v615 = vand.u32 %v614, 4294901760
        %616 = vmatmul.f32.gmra.mxu0 %v615
        %v617 = vpop.f32.mrf.mxu0
        %v618 = vadd.f32 %v587, %v617
        %619 = vdwg.mxu0
        %620 = vmatpush.msra.mxu0 0.0
        %621 = vmatpush.msra.mxu0 0.0
        %622 = vmatpush.msra.mxu0 0.0
        %623 = vmatpush.msra.mxu0 0.0
        %624 = vmatpush.msra.mxu0 0.0
        %625 = vmatpush.msra.mxu0 0.0
        %626 = vmatpush.msra.mxu0 0.0
        %627 = vmatpush.msra.mxu0 0.0
        %628 = vmatpush.msra.mxu0 0.0
        %629 = vmatpush.msra.mxu0 0.0
        %630 = vmatpush.msra.mxu0 0.0
        %631 = vmatpush.msra.mxu0 0.0
        %v632 = vand.u32 %v149, 4294901760
        %v633 = vsub.f32 %v149, %v632
        %v634 = vand.u32 %v633, 4294901760
        %v635 = vsub.f32 %v633, %v634
        %v636 = vand.u32 %v635, 4294901760
        %637 = vmatpush.msra.mxu0 %v636
        %v638 = vand.u32 %v148, 4294901760
        %v639 = vsub.f32 %v148, %v638
        %v640 = vand.u32 %v639, 4294901760
        %v641 = vsub.f32 %v639, %v640
        %v642 = vand.u32 %v641, 4294901760
        %643 = vmatpush.msra.mxu0 %v642
        %v644 = vand.u32 %v147, 4294901760
        %v645 = vsub.f32 %v147, %v644
        %v646 = vand.u32 %v645, 4294901760
        %v647 = vsub.f32 %v645, %v646
        %v648 = vand.u32 %v647, 4294901760
        %649 = vmatpush.msra.mxu0 %v648
        %v650 = vand.u32 %v146, 4294901760
        %v651 = vsub.f32 %v146, %v650
        %v652 = vand.u32 %v651, 4294901760
        %v653 = vsub.f32 %v651, %v652
        %v654 = vand.u32 %v653, 4294901760
        %655 = vmatpush.msra.mxu0 %v654
        %v656 = vand.u32 %v589, 4294901760
        %657 = vmatmul.f32.gmra.mxu0 %v656
        %v658 = vpop.f32.mrf.mxu0
        %v659 = vadd.f32 %v618, %v658
        %660 = vdwg.mxu0
        %661 = vmatpush.msra.mxu0 0.0
        %662 = vmatpush.msra.mxu0 0.0
        %663 = vmatpush.msra.mxu0 0.0
        %664 = vmatpush.msra.mxu0 0.0
        %665 = vmatpush.msra.mxu0 0.0
        %666 = vmatpush.msra.mxu0 0.0
        %667 = vmatpush.msra.mxu0 0.0
        %668 = vmatpush.msra.mxu0 0.0
        %669 = vmatpush.msra.mxu0 0.0
        %670 = vmatpush.msra.mxu0 0.0
        %671 = vmatpush.msra.mxu0 0.0
        %672 = vmatpush.msra.mxu0 0.0
        %v673 = vand.u32 %v149, 4294901760
        %v674 = vsub.f32 %v149, %v673
        %675 = vmatpush.msra.mxu0 %v674
        %v676 = vand.u32 %v148, 4294901760
        %v677 = vsub.f32 %v148, %v676
        %678 = vmatpush.msra.mxu0 %v677
        %v679 = vand.u32 %v147, 4294901760
        %v680 = vsub.f32 %v147, %v679
        %681 = vmatpush.msra.mxu0 %v680
        %v682 = vand.u32 %v146, 4294901760
        %v683 = vsub.f32 %v146, %v682
        %684 = vmatpush.msra.mxu0 %v683
        %v685 = vand.u32 %v589, 4294901760
        %v686 = vsub.f32 %v589, %v685
        %687 = vmatmul.f32.gmra.mxu0 %v686
        %v688 = vpop.f32.mrf.mxu0
        %v689 = vadd.f32 %v659, %v688
        %690 = vdwg.mxu0
        %691 = vmatpush.msra.mxu0 0.0
        %692 = vmatpush.msra.mxu0 0.0
        %693 = vmatpush.msra.mxu0 0.0
        %694 = vmatpush.msra.mxu0 0.0
        %695 = vmatpush.msra.mxu0 0.0
        %696 = vmatpush.msra.mxu0 0.0
        %697 = vmatpush.msra.mxu0 0.0
        %698 = vmatpush.msra.mxu0 0.0
        %699 = vmatpush.msra.mxu0 0.0
        %700 = vmatpush.msra.mxu0 0.0
        %701 = vmatpush.msra.mxu0 0.0
        %702 = vmatpush.msra.mxu0 0.0
        %v703 = vand.u32 %v149, 4294901760
        %704 = vmatpush.msra.mxu0 %v703
        %v705 = vand.u32 %v148, 4294901760
        %706 = vmatpush.msra.mxu0 %v705
        %v707 = vand.u32 %v147, 4294901760
        %708 = vmatpush.msra.mxu0 %v707
        %v709 = vand.u32 %v146, 4294901760
        %710 = vmatpush.msra.mxu0 %v709
        %v711 = vand.u32 %v589, 4294901760
        %v712 = vsub.f32 %v589, %v711
        %v713 = vand.u32 %v712, 4294901760
        %714 = vmatmul.f32.gmra.mxu0 %v713
        %v715 = vpop.f32.mrf.mxu0
        %v716 = vadd.f32 %v689, %v715
        %717 = vdwg.mxu0
        %718 = vmatpush.msra.mxu0 0.0
        %719 = vmatpush.msra.mxu0 0.0
        %720 = vmatpush.msra.mxu0 0.0
        %721 = vmatpush.msra.mxu0 0.0
        %722 = vmatpush.msra.mxu0 0.0
        %723 = vmatpush.msra.mxu0 0.0
        %724 = vmatpush.msra.mxu0 0.0
        %725 = vmatpush.msra.mxu0 0.0
        %726 = vmatpush.msra.mxu0 0.0
        %727 = vmatpush.msra.mxu0 0.0
        %728 = vmatpush.msra.mxu0 0.0
        %729 = vmatpush.msra.mxu0 0.0
        %v730 = vand.u32 %v149, 4294901760
        %v731 = vsub.f32 %v149, %v730
        %v732 = vand.u32 %v731, 4294901760
        %733 = vmatpush.msra.mxu0 %v732
        %v734 = vand.u32 %v148, 4294901760
        %v735 = vsub.f32 %v148, %v734
        %v736 = vand.u32 %v735, 4294901760
        %737 = vmatpush.msra.mxu0 %v736
        %v738 = vand.u32 %v147, 4294901760
        %v739 = vsub.f32 %v147, %v738
        %v740 = vand.u32 %v739, 4294901760
        %741 = vmatpush.msra.mxu0 %v740
        %v742 = vand.u32 %v146, 4294901760
        %v743 = vsub.f32 %v146, %v742
        %v744 = vand.u32 %v743, 4294901760
        %745 = vmatpush.msra.mxu0 %v744
        %v746 = vand.u32 %v589, 4294901760
        %747 = vmatmul.f32.gmra.mxu0 %v746
        %v748 = vpop.f32.mrf.mxu0
        %v749 = vadd.f32 %v716, %v748
        %750 = vdwg.mxu0
        %751 = vmatpush.msra.mxu0 0.0
        %752 = vmatpush.msra.mxu0 0.0
        %753 = vmatpush.msra.mxu0 0.0
        %754 = vmatpush.msra.mxu0 0.0
        %755 = vmatpush.msra.mxu0 0.0
        %756 = vmatpush.msra.mxu0 0.0
        %757 = vmatpush.msra.mxu0 0.0
        %758 = vmatpush.msra.mxu0 0.0
        %759 = vmatpush.msra.mxu0 0.0
        %760 = vmatpush.msra.mxu0 0.0
        %761 = vmatpush.msra.mxu0 0.0
        %762 = vmatpush.msra.mxu0 0.0
        %v763 = vand.u32 %v149, 4294901760
        %764 = vmatpush.msra.mxu0 %v763
        %v765 = vand.u32 %v148, 4294901760
        %766 = vmatpush.msra.mxu0 %v765
        %v767 = vand.u32 %v147, 4294901760
        %768 = vmatpush.msra.mxu0 %v767
        %v769 = vand.u32 %v146, 4294901760
        %770 = vmatpush.msra.mxu0 %v769
        %v771 = vand.u32 %v589, 4294901760
        %772 = vmatmul.f32.gmra.mxu0 %v771
        %v773 = vpop.f32.mrf.mxu0
        %v774 = vadd.f32 %v749, %v773
        %775 = vdwg.mxu0
        %v776 = vtanh.pop %v774
        %777 = vst.msk [vmem:[%s134] sm:$0xff] %vm151, %v776
        %s778 = sand.u32 %s71, 1
        %s779 = scalar_lea.sflag [#allocation3], %s778
        %s780 = sand.u32 %s71, 1
        %s781 = smul.addr %s780, 8
        %s782 = scalar_lea.vmem [#allocation2], %s781
        // Predicated region
        $region29: #{tpu_custom_call.1} parent=27 // pred_check
          %p783 = pneg %p81
        $region30: #{tpu_custom_call.1} parent=27 // pred_check_branch
          %785 = sbr.rel (%p783) target = $region32
        $region31: #{tpu_custom_call.1} parent=27 // pred_region
          %787 = vsyncadd %s779, 0
          %s788 = smul.addr %s16, 8
          %s789 = scalar_lea.hbm %s2, %s788
          %s791 = sshll.u32 %s782, 4
          %s792 = int_to_ptr.vmem [resolvable:$true] %s791
          %s793 = sshll.u32 %s789, 4
          %s794 = int_to_ptr.hbm [resolvable:$true] %s793
          %796 = dma.vmem_to_hbm [thread:$0]  %s792, 128, %s794, %s779
        $region32: #{tpu_custom_call.1} parent=27 // pred_fallthru
          _
      $region28: #{tpu_custom_call.1} parent=5 // pred_fallthru
        _
      %p797 = scmp.le.s32.totalorder 2, %s11
      // Predicated region
      $region33: #{tpu_custom_call.1} parent=5 // pred_check
        %p798 = pneg %p797
      $region34: #{tpu_custom_call.1} parent=5 // pred_check_branch
        %800 = sbr.rel (%p798) target = $region36
      $region35: #{tpu_custom_call.1} parent=5 // pred_region
        %s801 = ssub.s32 %s11, 2
        // Predicated region
        $region37: #{tpu_custom_call.1} parent=35 // pred_check
          %p802 = pneg %p87
        $region38: #{tpu_custom_call.1} parent=35 // pred_check_branch
          %804 = sbr.rel (%p802) target = $region40
        $region39: #{tpu_custom_call.1} parent=35 // pred_region
          %s805 = sand.u32 %s72, 1
          %s806 = scalar_lea.sflag [#allocation3], %s805
          %s807 = sand.u32 %s72, 1
          %s808 = smul.addr %s807, 8
          %s809 = scalar_lea.vmem [#allocation2], %s808
          %811 = dma.done %s806, 128
        $region40: #{tpu_custom_call.1} parent=35 // pred_fallthru
          _
      $region36: #{tpu_custom_call.1} parent=5 // pred_fallthru
        _
    $region6: #{tpu_custom_call.1} parent=1 // loop_footer
      %s15 = sadd.s32 1, %s11
    $region7: #{tpu_custom_call.1} parent=1 // loop_footer_branch
      %10 = sbr.rel target = $region3
    $region8: #{tpu_custom_call.1} parent=1 // loop_exit
      _
    %812 = vsyncpa [#allocation3], 1
    %s813 = scalar_lea.sflag [#allocation3], 1
    %814 = vsyncpa %s813, 1

</llo_original>
